<compile_context>
chip_gen: v6e
topology: v6e:2x2x1
jax: 0.10.0
libtpu: 0.0.40
codegen_flags: <defaults>
</compile_context>

<pallas_src>
import jax
import jax.numpy as jnp
from jax.experimental import pallas as pl
from jax.experimental.pallas import tpu as pltpu


def _encoder_kernel(x_ref, w1_ref, b1_ref, pool_ref, w2_ref, b2_ref, o_ref):
    # x_ref block: (NB*P, Fin) bf16 patch slab for NB samples.
    # Patch embedding (conv-as-matmul) for the whole slab: one MXU pass.
    h = jnp.dot(x_ref[...], w1_ref[...], preferred_element_type=jnp.float32)
    # Bias + GELU in f32 (v5e has no bf16 VPU/EUP path).
    # TODO(synk): PyTorch nn.GELU defaults to exact erf; tanh approximation used
    # here (matches the in-script reference).
    h = jax.nn.gelu(h + b1_ref[...])                               # [NB*P, H]
    # Per-sample mean pool as an MXU matmul with a block-diagonal (1/P) matrix.
    pooled = jnp.dot(pool_ref[...], h,
                     preferred_element_type=jnp.float32)           # [NB, H]
    # Final linear projection (embed dim padded to 128 lanes in the wrapper).
    z = jnp.dot(pooled, w2_ref[...],
                preferred_element_type=jnp.float32) + b2_ref[...]  # [NB, Epad]
    o_ref[...] = z.astype(o_ref.dtype)


def inference_encoder_forward(x_nchw, params, *, patch=4, nb=None):
    """x_nchw: [N, C, H, W] float32 -> z: [N, E] float32."""
    w1, b1, w2, b2 = params["w1"], params["b1"], params["w2"], params["b2"]
    N, C, H, W = x_nchw.shape
    assert H % patch == 0 and W % patch == 0
    Ph, Pw = H // patch, W // patch
    P = Ph * Pw
    Fin = C * patch * patch
    hidden = w1.shape[1]
    embed = w2.shape[1]

    # Samples per grid step: multiple of 8 sublanes, capped so the bf16 patch
    # slab (2 x NB*P*Fin*2 B double-buffered) stays tiny vs. the VMEM budget
    # (re-derive the cap if C/H/W grow; budget against 64 MiB physical on v7x).
    if nb is None:
        nb = min(64, max(8, 8 * pl.cdiv(N, 8)))
    NB = nb
    n_blocks = pl.cdiv(N, NB)
    N_pad = n_blocks * NB
    embed_pad = pl.cdiv(embed, 128) * 128      # lane-dense output stores

    # Patch extraction (im2col), flattened in (C, ph, pw) order to match a
    # torch Conv2d(patch, stride=patch) weight flattening.
    # TODO(synk): this transpose materializes an extra HBM copy of the input;
    # for large images fold it into the kernel via row-slab DMAs instead.
    patches = x_nchw.reshape(N, C, Ph, patch, Pw, patch)
    patches = patches.transpose(0, 2, 4, 1, 3, 5)          # [N, Ph, Pw, C, p, p]
    patches = patches.reshape(N * P, Fin)
    if N_pad != N:
        patches = jnp.pad(patches, ((0, (N_pad - N) * P), (0, 0)))
    patches = patches.astype(jnp.bfloat16)                 # halve HBM->VMEM bytes
    w1_bf = w1.astype(jnp.bfloat16)
    b1_f = b1.astype(jnp.float32)

    # Block-diagonal mean-pool matrix: row i has 1/P over columns [i*P,(i+1)*P).
    sample_ids = jnp.arange(NB * P, dtype=jnp.int32) // P
    pool = (sample_ids[None, :] == jnp.arange(NB, dtype=jnp.int32)[:, None])
    pool = pool.astype(jnp.float32) * (1.0 / float(P))     # [NB, NB*P]

    # Pad the embedding dim to a multiple of 128 lanes (zeros -> exact result).
    w2_p = jnp.zeros((hidden, embed_pad), jnp.float32).at[:, :embed].set(w2)
    b2_p = jnp.zeros((1, embed_pad), jnp.float32).at[:, :embed].set(b2)

    flops = (2 * N_pad * P * Fin * hidden            # patch embedding
             + 2 * N_pad * NB * P * hidden           # pooling matmul
             + 2 * N_pad * hidden * embed_pad)       # projection
    bytes_accessed = (patches.size * 2 + w1_bf.size * 2
                      + (b1_f.size + pool.size + w2_p.size + b2_p.size) * 4
                      + N_pad * embed_pad * 4)
    cost = pl.CostEstimate(flops=flops,
                           transcendentals=N_pad * P * hidden,
                           bytes_accessed=bytes_accessed)

    out = pl.pallas_call(
        _encoder_kernel,
        out_shape=jax.ShapeDtypeStruct((N_pad, embed_pad), jnp.float32),
        grid_spec=pltpu.PrefetchScalarGridSpec(
            num_scalar_prefetch=0,
            grid=(n_blocks,),
            in_specs=[
                pl.BlockSpec((NB * P, Fin), lambda b: (b, 0)),      # patch slab
                pl.BlockSpec((Fin, hidden), lambda b: (0, 0)),      # w1 (resident)
                pl.BlockSpec((1, hidden), lambda b: (0, 0)),        # b1
                pl.BlockSpec((NB, NB * P), lambda b: (0, 0)),       # pool matrix
                pl.BlockSpec((hidden, embed_pad), lambda b: (0, 0)),  # w2 (padded)
                pl.BlockSpec((1, embed_pad), lambda b: (0, 0)),     # b2 (padded)
            ],
            out_specs=pl.BlockSpec((NB, embed_pad), lambda b: (b, 0)),
        ),
        compiler_params=pltpu.CompilerParams(
            dimension_semantics=("parallel",),
            vmem_limit_bytes=32 * 1024 * 1024),
        cost_estimate=cost,
    )(patches, w1_bf, b1_f, pool, w2_p, b2_p)

    return out[:N, :embed]


def build_params(key, *, C=4, patch=4, hidden=32, embed=32):
    """Deterministic synthetic weights (stand-in for the abstract _build)."""
    Fin = C * patch * patch
    k1, k2, k3, k4 = jax.random.split(key, 4)
    w1 = jax.random.normal(k1, (Fin, hidden), jnp.float32) * (1.0 / jnp.sqrt(Fin))
    b1 = jax.random.normal(k2, (1, hidden), jnp.float32) * 0.02
    w2 = jax.random.normal(k3, (hidden, embed), jnp.float32) * (1.0 / jnp.sqrt(hidden))
    b2 = jax.random.normal(k4, (1, embed), jnp.float32) * 0.02
    return {"w1": w1, "b1": b1, "w2": w2, "b2": b2}


def _reference_forward(x_nchw, params, *, patch=4):
    """Pure-JAX f32 reference for correctness checking."""
    N, C, H, W = x_nchw.shape
    Ph, Pw = H // patch, W // patch
    patches = x_nchw.reshape(N, C, Ph, patch, Pw, patch)
    patches = patches.transpose(0, 2, 4, 1, 3, 5).reshape(N, Ph * Pw, -1)
    h = jax.nn.gelu(patches @ params["w1"] + params["b1"])
    pooled = h.mean(axis=1)
    return pooled @ params["w2"] + params["b2"][0]


if __name__ == "__main__":
    key = jax.random.PRNGKey(0)
    kx, kp = jax.random.split(key)

    # Small shapes consistent with an image-encoder forward: NCHW input.
    N, C, H, W = 2, 4, 16, 16
    x = jax.random.normal(kx, (N, C, H, W), jnp.float32)
    params = build_params(kp, C=C, patch=4, hidden=32, embed=32)

    z = inference_encoder_forward(x, params)
    z = jax.block_until_ready(z)

    z_ref = _reference_forward(x, params)
    assert z.shape == (N, 32), z.shape
    # bf16 matmul inputs (f32 accumulation) -> widened tolerance vs. f32 ref.
    assert jnp.allclose(z, z_ref, atol=5e-2, rtol=5e-2), "mismatch vs reference"

    print("KERNEL_OK")
</pallas_src>

<mosaic_0001>
module attributes {stable_mosaic.version = 11 : i64} {
  func.func @_encoder_kernel(%arg0: i32, %arg1: memref<128x64xbf16, #tpu.memory_space<vmem>>, %arg2: memref<64x32xbf16, #tpu.memory_space<vmem>>, %arg3: memref<1x32xf32, #tpu.memory_space<vmem>>, %arg4: memref<8x128xf32, #tpu.memory_space<vmem>>, %arg5: memref<32x128xf32, #tpu.memory_space<vmem>>, %arg6: memref<1x128xf32, #tpu.memory_space<vmem>>, %arg7: memref<8x128xf32, #tpu.memory_space<vmem>>) attributes {dimension_semantics = [#tpu.dimension_semantics<parallel>], iteration_bounds = array<i64: 1>, scalar_prefetch = 0 : i64, scratch_operands = 0 : i64, tpu.core_type = #tpu.core_type<tc>, window_params = [{transform_indices = @transform_0, window_bounds = array<i64: 128, 64>}, {pipeline_mode = #tpu.pipeline_mode<synchronous>, transform_indices = @transform_1, window_bounds = array<i64: 64, 32>}, {pipeline_mode = #tpu.pipeline_mode<synchronous>, transform_indices = @transform_2, window_bounds = array<i64: 1, 32>}, {pipeline_mode = #tpu.pipeline_mode<synchronous>, transform_indices = @transform_3, window_bounds = array<i64: 8, 128>}, {pipeline_mode = #tpu.pipeline_mode<synchronous>, transform_indices = @transform_4, window_bounds = array<i64: 32, 128>}, {pipeline_mode = #tpu.pipeline_mode<synchronous>, transform_indices = @transform_5, window_bounds = array<i64: 1, 128>}, {transform_indices = @transform_6, window_bounds = array<i64: 8, 128>}]} {
    %c0 = arith.constant 0 : index
    %c0_0 = arith.constant 0 : index
    %0 = vector.load %arg1[%c0, %c0_0] : memref<128x64xbf16, #tpu.memory_space<vmem>>, vector<128x64xbf16>
    %c0_1 = arith.constant 0 : index
    %c0_2 = arith.constant 0 : index
    %1 = vector.load %arg2[%c0_1, %c0_2] : memref<64x32xbf16, #tpu.memory_space<vmem>>, vector<64x32xbf16>
    %cst = arith.constant dense<0.000000e+00> : vector<128x32xf32>
    %2 = tpu.matmul %0, %1, %cst {dimension_numbers = #tpu.dot_dimension_numbers<[1], [0], [0], [1], [0, 0, 1, 1], [], []>} : vector<128x64xbf16>, vector<64x32xbf16>, vector<128x32xf32> -> vector<128x32xf32>
    %c0_3 = arith.constant 0 : index
    %c0_4 = arith.constant 0 : index
    %3 = vector.load %arg3[%c0_3, %c0_4] : memref<1x32xf32, #tpu.memory_space<vmem>>, vector<1x32xf32>
    %4 = vector.broadcast %3 : vector<1x32xf32> to vector<128x32xf32>
    %5 = arith.addf %2, %4 : vector<128x32xf32>
    %6 = arith.mulf %5, %5 : vector<128x32xf32>
    %7 = arith.mulf %5, %6 : vector<128x32xf32>
    %cst_5 = arith.constant 4.471500e-02 : f32
    %8 = vector.broadcast %cst_5 : f32 to vector<128x32xf32>
    %9 = arith.mulf %8, %7 : vector<128x32xf32>
    %10 = arith.addf %5, %9 : vector<128x32xf32>
    %cst_6 = arith.constant 0.797884583 : f32
    %11 = vector.broadcast %cst_6 : f32 to vector<128x32xf32>
    %12 = arith.mulf %11, %10 : vector<128x32xf32>
    %13 = math.tanh %12 : vector<128x32xf32>
    %cst_7 = arith.constant 1.000000e+00 : f32
    %14 = vector.broadcast %cst_7 : f32 to vector<128x32xf32>
    %15 = arith.addf %14, %13 : vector<128x32xf32>
    %cst_8 = arith.constant 5.000000e-01 : f32
    %16 = vector.broadcast %cst_8 : f32 to vector<128x32xf32>
    %17 = arith.mulf %16, %15 : vector<128x32xf32>
    %18 = arith.mulf %5, %17 : vector<128x32xf32>
    %c0_9 = arith.constant 0 : index
    %c0_10 = arith.constant 0 : index
    %19 = vector.load %arg4[%c0_9, %c0_10] : memref<8x128xf32, #tpu.memory_space<vmem>>, vector<8x128xf32>
    %cst_11 = arith.constant dense<0.000000e+00> : vector<8x32xf32>
    %20 = tpu.matmul %19, %18, %cst_11 {dimension_numbers = #tpu.dot_dimension_numbers<[1], [0], [0], [1], [0, 0, 1, 1], [], []>} : vector<8x128xf32>, vector<128x32xf32>, vector<8x32xf32> -> vector<8x32xf32>
    %c0_12 = arith.constant 0 : index
    %c0_13 = arith.constant 0 : index
    %21 = vector.load %arg5[%c0_12, %c0_13] : memref<32x128xf32, #tpu.memory_space<vmem>>, vector<32x128xf32>
    %cst_14 = arith.constant dense<0.000000e+00> : vector<8x128xf32>
    %22 = tpu.matmul %20, %21, %cst_14 {dimension_numbers = #tpu.dot_dimension_numbers<[1], [0], [0], [1], [0, 0, 1, 1], [], []>} : vector<8x32xf32>, vector<32x128xf32>, vector<8x128xf32> -> vector<8x128xf32>
    %c0_15 = arith.constant 0 : index
    %c0_16 = arith.constant 0 : index
    %23 = vector.load %arg6[%c0_15, %c0_16] : memref<1x128xf32, #tpu.memory_space<vmem>>, vector<1x128xf32>
    %24 = vector.broadcast %23 : vector<1x128xf32> to vector<8x128xf32>
    %25 = arith.addf %22, %24 : vector<8x128xf32>
    %c0_17 = arith.constant 0 : index
    %c0_18 = arith.constant 0 : index
    %26 = vector.load %arg7[%c0_17, %c0_18] : memref<8x128xf32, #tpu.memory_space<vmem>>, vector<8x128xf32>
    tpu.vector_store %arg7[%c0_17, %c0_18], %25 {strides = array<i32>} : memref<8x128xf32, #tpu.memory_space<vmem>>, vector<8x128xf32>,
    return
  }
  func.func @transform_0(%arg0: i32) -> (i32, i32) {
    %c0_i32 = arith.constant 0 : i32
    %c0_i32_0 = arith.constant 0 : i32
    return %arg0, %c0_i32 : i32, i32
  }
  func.func @transform_1(%arg0: i32) -> (i32, i32) {
    %c0_i32 = arith.constant 0 : i32
    %c0_i32_0 = arith.constant 0 : i32
    %c0_i32_1 = arith.constant 0 : i32
    return %c0_i32, %c0_i32_0 : i32, i32
  }
  func.func @transform_2(%arg0: i32) -> (i32, i32) {
    %c0_i32 = arith.constant 0 : i32
    %c0_i32_0 = arith.constant 0 : i32
    %c0_i32_1 = arith.constant 0 : i32
    return %c0_i32, %c0_i32_0 : i32, i32
  }
  func.func @transform_3(%arg0: i32) -> (i32, i32) {
    %c0_i32 = arith.constant 0 : i32
    %c0_i32_0 = arith.constant 0 : i32
    %c0_i32_1 = arith.constant 0 : i32
    return %c0_i32, %c0_i32_0 : i32, i32
  }
  func.func @transform_4(%arg0: i32) -> (i32, i32) {
    %c0_i32 = arith.constant 0 : i32
    %c0_i32_0 = arith.constant 0 : i32
    %c0_i32_1 = arith.constant 0 : i32
    return %c0_i32, %c0_i32_0 : i32, i32
  }
  func.func @transform_5(%arg0: i32) -> (i32, i32) {
    %c0_i32 = arith.constant 0 : i32
    %c0_i32_0 = arith.constant 0 : i32
    %c0_i32_1 = arith.constant 0 : i32
    return %c0_i32, %c0_i32_0 : i32, i32
  }
  func.func @transform_6(%arg0: i32) -> (i32, i32) {
    %c0_i32 = arith.constant 0 : i32
    %c0_i32_0 = arith.constant 0 : i32
    return %arg0, %c0_i32 : i32, i32
  }
}

</mosaic_0001>

<llo_original>
// kernel: tpu_custom_call.1
$region0: #{tpu_custom_call.1}
  #allocation0 [shape = 'u32[]', space=smem, size = 0x4, offset = 0x4, fixed_abs, tag = 'smem constant byte address 0x4 - core index']
  #allocation1 [shape = 'u32[144,128]{1,0:T(1,128)}', space=vmem, size = 0x12000, scoped, tag = 'internal scratch']
  %s0 = inlined_call_operand.vmem [shape: bf16[128,64], index: 0, kind: input, shape index: {}]
  %s1 = inlined_call_operand.vmem [shape: bf16[64,32], index: 1, kind: input, shape index: {}]
  %s2 = inlined_call_operand.vmem [shape: f32[1,32], index: 2, kind: input, shape index: {}]
  %s3 = inlined_call_operand.vmem [shape: f32[8,128], index: 3, kind: input, shape index: {}]
  %s4 = inlined_call_operand.vmem [shape: f32[32,128], index: 4, kind: input, shape index: {}]
  %s5 = inlined_call_operand.vmem [shape: f32[1,128], index: 5, kind: input, shape index: {}]
  %s6 = inlined_call_operand.hbm [shape: f32[8,128], index: 6, kind: output, shape index: {}]
  %s7 = sld [smem:[#allocation0]]
  $region34: #{tpu_custom_call.1} parent=0
    _
  %s9 = ssub.s32 1, %s7
  %s10 = scalar_select 0, %s9, %s7
  $region1: #{tpu_custom_call.1} parent=0
    #allocation2 [shape = 'u8[4096]{0}', space=vmem, size = 0x1000, scoped, tag = 'output window, operand 0, single buffered']
    #allocation3 [shape = 's32[1]{0}', space=sflag, size = 0x4, scoped, tag = 'scoped memory for tpu_custom_call.1']
    %11 = vsyncpa [#allocation3], 0
    // Predicated region
    $region2: #{tpu_custom_call.1} parent=1 // pred_check
      _
    $region3: #{tpu_custom_call.1} parent=1 // pred_check_branch
      %13 = sbr.rel (0) target = $region5
    $region4: #{tpu_custom_call.1} parent=1 // pred_region
      _
    $region5: #{tpu_custom_call.1} parent=1 // pred_fallthru
      _
    // Predicated region
    $region6: #{tpu_custom_call.1} parent=1 // pred_check
      _
    $region7: #{tpu_custom_call.1} parent=1 // pred_check_branch
      %15 = sbr.rel (0) target = $region9
    $region8: #{tpu_custom_call.1} parent=1 // pred_region
      _
    $region9: #{tpu_custom_call.1} parent=1 // pred_fallthru
      _
    // Predicated region
    $region10: #{tpu_custom_call.1} parent=1 // pred_check
      _
    $region11: #{tpu_custom_call.1} parent=1 // pred_check_branch
      %17 = sbr.rel (0) target = $region13
    $region12: #{tpu_custom_call.1} parent=1 // pred_region
      _
    $region13: #{tpu_custom_call.1} parent=1 // pred_fallthru
      _
    // Predicated region
    $region14: #{tpu_custom_call.1} parent=1 // pred_check
      _
    $region15: #{tpu_custom_call.1} parent=1 // pred_check_branch
      %19 = sbr.rel (0) target = $region17
    $region16: #{tpu_custom_call.1} parent=1 // pred_region
      _
    $region17: #{tpu_custom_call.1} parent=1 // pred_fallthru
      _
    // Predicated region
    $region18: #{tpu_custom_call.1} parent=1 // pred_check
      _
    $region19: #{tpu_custom_call.1} parent=1 // pred_check_branch
      %21 = sbr.rel (0) target = $region21
    $region20: #{tpu_custom_call.1} parent=1 // pred_region
      _
    $region21: #{tpu_custom_call.1} parent=1 // pred_fallthru
      _
    // Predicated region
    $region22: #{tpu_custom_call.1} parent=1 // pred_check
      _
    $region23: #{tpu_custom_call.1} parent=1 // pred_check_branch
      %23 = sbr.rel (0) target = $region25
    $region24: #{tpu_custom_call.1} parent=1 // pred_region
      _
    $region25: #{tpu_custom_call.1} parent=1 // pred_fallthru
      _
    %v25 = vld [vmem:[%s0] sm:$0xf]
    %v26 = vld [vmem:[%s0 + $0x4] sm:$0xf]
    %v27 = vld [vmem:[%s0 + $0x8] sm:$0xf]
    %v28 = vld [vmem:[%s0 + $0xc] sm:$0xf]
    %v29 = vld [vmem:[%s0 + $0x10] sm:$0xf]
    %v30 = vld [vmem:[%s0 + $0x14] sm:$0xf]
    %v31 = vld [vmem:[%s0 + $0x18] sm:$0xf]
    %v32 = vld [vmem:[%s0 + $0x1c] sm:$0xf]
    %v33 = vld [vmem:[%s0 + $0x20] sm:$0xf]
    %v34 = vld [vmem:[%s0 + $0x24] sm:$0xf]
    %v35 = vld [vmem:[%s0 + $0x28] sm:$0xf]
    %v36 = vld [vmem:[%s0 + $0x2c] sm:$0xf]
    %v37 = vld [vmem:[%s0 + $0x30] sm:$0xf]
    %v38 = vld [vmem:[%s0 + $0x34] sm:$0xf]
    %v39 = vld [vmem:[%s0 + $0x38] sm:$0xf]
    %v40 = vld [vmem:[%s0 + $0x3c] sm:$0xf]
    %v41 = vld [vmem:[%s1] sm:$0xf]
    %v42 = vld [vmem:[%s1 + $0x4] sm:$0xf]
    %v43 = vld [vmem:[%s1 + $0x8] sm:$0xf]
    %v44 = vld [vmem:[%s1 + $0xc] sm:$0xf]
    %v45 = vld [vmem:[%s1 + $0x10] sm:$0xf]
    %v46 = vld [vmem:[%s1 + $0x14] sm:$0xf]
    %v47 = vld [vmem:[%s1 + $0x18] sm:$0xf]
    %v48 = vld [vmem:[%s1 + $0x1c] sm:$0xf]
    %v49 = vld [vmem:[%s2] sm:$0x1]
    %v51 = vlaneseq
    %v52 = vshrl.u32 %v51, 7
    %v53 = vsub.s32 0, %v52
    %v54 = vrot.slane %v49, %v53
    %v72 = vunpack.c.l.b16 %v25
    %v73 = vunpack.c.l.b16 %v26
    %v74 = vunpack.c.l.b16 %v27
    %v75 = vunpack.c.l.b16 %v28
    %v76 = vunpack.c.l.b16 %v29
    %v77 = vunpack.c.l.b16 %v30
    %v78 = vunpack.c.l.b16 %v31
    %v79 = vunpack.c.l.b16 %v32
    %v80 = vunpack.c.l.b16 %v33
    %v81 = vunpack.c.l.b16 %v34
    %v82 = vunpack.c.l.b16 %v35
    %v83 = vunpack.c.l.b16 %v36
    %v84 = vunpack.c.l.b16 %v37
    %v85 = vunpack.c.l.b16 %v38
    %v86 = vunpack.c.l.b16 %v39
    %v87 = vunpack.c.l.b16 %v40
    %v88 = vpack.c.b16 %v73, %v72
    %v89 = vpack.c.b16 %v75, %v74
    %v90 = vpack.c.b16 %v77, %v76
    %v91 = vpack.c.b16 %v79, %v78
    %v92 = vpack.c.b16 %v81, %v80
    %v93 = vpack.c.b16 %v83, %v82
    %v94 = vpack.c.b16 %v85, %v84
    %v95 = vpack.c.b16 %v87, %v86
    %v104 = vunpack.c.l.b16 %v41
    %v105 = vunpack.c.l.b16 %v42
    %v106 = vunpack.c.l.b16 %v43
    %v107 = vunpack.c.l.b16 %v44
    %v108 = vunpack.c.l.b16 %v45
    %v109 = vunpack.c.l.b16 %v46
    %v110 = vunpack.c.l.b16 %v47
    %v111 = vunpack.c.l.b16 %v48
    %v112 = vpack.c.b16 %v105, %v104
    %v113 = vpack.c.b16 %v107, %v106
    %v114 = vpack.c.b16 %v109, %v108
    %v115 = vpack.c.b16 %v111, %v110
    %vm120 = vcmask 523264
    %v122 = vsel %vm120, %v88, 0
    %v125 = vsel %vm120, %v89, 0
    %v128 = vsel %vm120, %v90, 0
    %v131 = vsel %vm120, %v91, 0
    %v134 = vsel %vm120, %v92, 0
    %v137 = vsel %vm120, %v93, 0
    %v140 = vsel %vm120, %v94, 0
    %v143 = vsel %vm120, %v95, 0
    %145 = vmatprep.subr.bf16.mxu0 0
    %146 = vmatpush1.bf16.msra.mxu0 0
    %147 = vmatprep.subr.bf16.mxu0 0
    %148 = vmatpush1.bf16.msra.mxu0 0
    %149 = vmatprep.subr.bf16.mxu0 0
    %150 = vmatpush1.bf16.msra.mxu0 0
    %151 = vmatprep.subr.bf16.mxu0 0
    %152 = vmatpush1.bf16.msra.mxu0 0
    %153 = vmatprep.subr.bf16.mxu0 0
    %154 = vmatpush1.bf16.msra.mxu0 %v115
    %155 = vmatprep.subr.bf16.mxu0 0
    %156 = vmatpush1.bf16.msra.mxu0 %v114
    %157 = vmatprep.subr.bf16.mxu0 0
    %158 = vmatpush1.bf16.msra.mxu0 %v113
    %159 = vmatprep.subr.bf16.mxu0 0
    %160 = vmatpush1.bf16.msra.mxu0 %v112
    %161 = vmatprep.subr.bf16.mxu0 0
    %162 = vmatpush2.bf16.msra.mxu0 0
    %163 = vmatprep.subr.bf16.mxu0 0
    %164 = vmatpush2.bf16.msra.mxu0 0
    %165 = vmatprep.subr.bf16.mxu0 0
    %166 = vmatpush2.bf16.msra.mxu0 0
    %167 = vmatprep.subr.bf16.mxu0 0
    %168 = vmatpush2.bf16.msra.mxu0 0
    %169 = vmatprep.subr.bf16.mxu0 0
    %170 = vmatpush2.bf16.msra.mxu0 0
    %171 = vmatprep.subr.bf16.mxu0 0
    %172 = vmatpush2.bf16.msra.mxu0 0
    %173 = vmatprep.subr.bf16.mxu0 0
    %174 = vmatpush2.bf16.msra.mxu0 0
    %175 = vmatprep.subr.bf16.mxu0 0
    %176 = vmatpush2.bf16.msra.mxu0 0
    %177 = vmatprep.mubr.bf16.mxu0 0
    %178 = vmatmul.mubr.bf16.gmra.mxu0 %v122
    %v179 = vpop.f32.mrf.mxu0
    %v180 = vadd.f32 %v54, %v179
    %v181 = vpop.f32.mrf.mxu0
    %v182 = vpop.f32.mrf.mxu0
    %v183 = vadd.f32 %v54, %v182
    %v184 = vpop.f32.mrf.mxu0
    %185 = vmatprep.mubr.bf16.mxu0 0
    %186 = vmatmul.mubr.bf16.gmra.mxu0 %v125
    %v187 = vpop.f32.mrf.mxu0
    %v188 = vadd.f32 %v54, %v187
    %v189 = vpop.f32.mrf.mxu0
    %v190 = vpop.f32.mrf.mxu0
    %v191 = vadd.f32 %v54, %v190
    %v192 = vpop.f32.mrf.mxu0
    %193 = vmatprep.mubr.bf16.mxu0 0
    %194 = vmatmul.mubr.bf16.gmra.mxu0 %v128
    %v195 = vpop.f32.mrf.mxu0
    %v196 = vadd.f32 %v54, %v195
    %v197 = vpop.f32.mrf.mxu0
    %v198 = vpop.f32.mrf.mxu0
    %v199 = vadd.f32 %v54, %v198
    %v200 = vpop.f32.mrf.mxu0
    %201 = vmatprep.mubr.bf16.mxu0 0
    %202 = vmatmul.mubr.bf16.gmra.mxu0 %v131
    %v203 = vpop.f32.mrf.mxu0
    %v204 = vadd.f32 %v54, %v203
    %v205 = vpop.f32.mrf.mxu0
    %v206 = vpop.f32.mrf.mxu0
    %v207 = vadd.f32 %v54, %v206
    %v208 = vpop.f32.mrf.mxu0
    %209 = vmatprep.mubr.bf16.mxu0 0
    %210 = vmatmul.mubr.bf16.gmra.mxu0 %v134
    %v211 = vpop.f32.mrf.mxu0
    %v212 = vadd.f32 %v54, %v211
    %v213 = vpop.f32.mrf.mxu0
    %v214 = vpop.f32.mrf.mxu0
    %v215 = vadd.f32 %v54, %v214
    %v216 = vpop.f32.mrf.mxu0
    %217 = vmatprep.mubr.bf16.mxu0 0
    %218 = vmatmul.mubr.bf16.gmra.mxu0 %v137
    %v219 = vpop.f32.mrf.mxu0
    %v220 = vadd.f32 %v54, %v219
    %v221 = vpop.f32.mrf.mxu0
    %v222 = vpop.f32.mrf.mxu0
    %v223 = vadd.f32 %v54, %v222
    %v224 = vpop.f32.mrf.mxu0
    %225 = vmatprep.mubr.bf16.mxu0 0
    %226 = vmatmul.mubr.bf16.gmra.mxu0 %v140
    %v227 = vpop.f32.mrf.mxu0
    %v228 = vadd.f32 %v54, %v227
    %v229 = vpop.f32.mrf.mxu0
    %v230 = vpop.f32.mrf.mxu0
    %v231 = vadd.f32 %v54, %v230
    %v232 = vpop.f32.mrf.mxu0
    %233 = vmatprep.mubr.bf16.mxu0 0
    %234 = vmatmul.mubr.bf16.gmra.mxu0 %v143
    %v235 = vpop.f32.mrf.mxu0
    %v236 = vadd.f32 %v54, %v235
    %v237 = vpop.f32.mrf.mxu0
    %v238 = vpop.f32.mrf.mxu0
    %v239 = vadd.f32 %v54, %v238
    %v240 = vpop.f32.mrf.mxu0
    %241 = vdwg.mxu0
    %v242 = vmul.f32 %v180, %v180
    %v243 = vmul.f32 %v183, %v183
    %v244 = vmul.f32 %v188, %v188
    %v245 = vmul.f32 %v191, %v191
    %v246 = vmul.f32 %v196, %v196
    %v247 = vmul.f32 %v199, %v199
    %v248 = vmul.f32 %v204, %v204
    %v249 = vmul.f32 %v207, %v207
    %v250 = vmul.f32 %v212, %v212
    %v251 = vmul.f32 %v215, %v215
    %v252 = vmul.f32 %v220, %v220
    %v253 = vmul.f32 %v223, %v223
    %v254 = vmul.f32 %v228, %v228
    %v255 = vmul.f32 %v231, %v231
    %v256 = vmul.f32 %v236, %v236
    %v257 = vmul.f32 %v239, %v239
    %v258 = vmul.f32 %v180, %v242
    %v259 = vmul.f32 %v183, %v243
    %v260 = vmul.f32 %v188, %v244
    %v261 = vmul.f32 %v191, %v245
    %v262 = vmul.f32 %v196, %v246
    %v263 = vmul.f32 %v199, %v247
    %v264 = vmul.f32 %v204, %v248
    %v265 = vmul.f32 %v207, %v249
    %v266 = vmul.f32 %v212, %v250
    %v267 = vmul.f32 %v215, %v251
    %v268 = vmul.f32 %v220, %v252
    %v269 = vmul.f32 %v223, %v253
    %v270 = vmul.f32 %v228, %v254
    %v271 = vmul.f32 %v231, %v255
    %v272 = vmul.f32 %v236, %v256
    %v273 = vmul.f32 %v239, %v257
    %v274 = vmul.f32 %v258, 0.044715
    %v275 = vmul.f32 %v259, 0.044715
    %v276 = vmul.f32 %v260, 0.044715
    %v277 = vmul.f32 %v261, 0.044715
    %v278 = vmul.f32 %v262, 0.044715
    %v279 = vmul.f32 %v263, 0.044715
    %v280 = vmul.f32 %v264, 0.044715
    %v281 = vmul.f32 %v265, 0.044715
    %v282 = vmul.f32 %v266, 0.044715
    %v283 = vmul.f32 %v267, 0.044715
    %v284 = vmul.f32 %v268, 0.044715
    %v285 = vmul.f32 %v269, 0.044715
    %v286 = vmul.f32 %v270, 0.044715
    %v287 = vmul.f32 %v271, 0.044715
    %v288 = vmul.f32 %v272, 0.044715
    %v289 = vmul.f32 %v273, 0.044715
    %v290 = vadd.f32 %v180, %v274
    %v291 = vadd.f32 %v183, %v275
    %v292 = vadd.f32 %v188, %v276
    %v293 = vadd.f32 %v191, %v277
    %v294 = vadd.f32 %v196, %v278
    %v295 = vadd.f32 %v199, %v279
    %v296 = vadd.f32 %v204, %v280
    %v297 = vadd.f32 %v207, %v281
    %v298 = vadd.f32 %v212, %v282
    %v299 = vadd.f32 %v215, %v283
    %v300 = vadd.f32 %v220, %v284
    %v301 = vadd.f32 %v223, %v285
    %v302 = vadd.f32 %v228, %v286
    %v303 = vadd.f32 %v231, %v287
    %v304 = vadd.f32 %v236, %v288
    %v305 = vadd.f32 %v239, %v289
    %v306 = vmul.f32 %v290, 0.7978846
    %v307 = vmul.f32 %v291, 0.7978846
    %v308 = vmul.f32 %v292, 0.7978846
    %v309 = vmul.f32 %v293, 0.7978846
    %v310 = vmul.f32 %v294, 0.7978846
    %v311 = vmul.f32 %v295, 0.7978846
    %v312 = vmul.f32 %v296, 0.7978846
    %v313 = vmul.f32 %v297, 0.7978846
    %v314 = vmul.f32 %v298, 0.7978846
    %v315 = vmul.f32 %v299, 0.7978846
    %v316 = vmul.f32 %v300, 0.7978846
    %v317 = vmul.f32 %v301, 0.7978846
    %v318 = vmul.f32 %v302, 0.7978846
    %v319 = vmul.f32 %v303, 0.7978846
    %v320 = vmul.f32 %v304, 0.7978846
    %v321 = vmul.f32 %v305, 0.7978846
    %v322 = vtanh.pop %v306
    %v323 = vtanh.pop %v307
    %v324 = vtanh.pop %v308
    %v325 = vtanh.pop %v309
    %v326 = vtanh.pop %v310
    %v327 = vtanh.pop %v311
    %v328 = vtanh.pop %v312
    %v329 = vtanh.pop %v313
    %v330 = vtanh.pop %v314
    %v331 = vtanh.pop %v315
    %v332 = vtanh.pop %v316
    %v333 = vtanh.pop %v317
    %v334 = vtanh.pop %v318
    %v335 = vtanh.pop %v319
    %v336 = vtanh.pop %v320
    %v337 = vtanh.pop %v321
    %v338 = vadd.f32 %v322, 1.0
    %v339 = vadd.f32 %v323, 1.0
    %v340 = vadd.f32 %v324, 1.0
    %v341 = vadd.f32 %v325, 1.0
    %v342 = vadd.f32 %v326, 1.0
    %v343 = vadd.f32 %v327, 1.0
    %v344 = vadd.f32 %v328, 1.0
    %v345 = vadd.f32 %v329, 1.0
    %v346 = vadd.f32 %v330, 1.0
    %v347 = vadd.f32 %v331, 1.0
    %v348 = vadd.f32 %v332, 1.0
    %v349 = vadd.f32 %v333, 1.0
    %v350 = vadd.f32 %v334, 1.0
    %v351 = vadd.f32 %v335, 1.0
    %v352 = vadd.f32 %v336, 1.0
    %v353 = vadd.f32 %v337, 1.0
    %v354 = vmul.f32 %v338, 0.5
    %v355 = vmul.f32 %v339, 0.5
    %v356 = vmul.f32 %v340, 0.5
    %v357 = vmul.f32 %v341, 0.5
    %v358 = vmul.f32 %v342, 0.5
    %v359 = vmul.f32 %v343, 0.5
    %v360 = vmul.f32 %v344, 0.5
    %v361 = vmul.f32 %v345, 0.5
    %v362 = vmul.f32 %v346, 0.5
    %v363 = vmul.f32 %v347, 0.5
    %v364 = vmul.f32 %v348, 0.5
    %v365 = vmul.f32 %v349, 0.5
    %v366 = vmul.f32 %v350, 0.5
    %v367 = vmul.f32 %v351, 0.5
    %v368 = vmul.f32 %v352, 0.5
    %v369 = vmul.f32 %v353, 0.5
    %v370 = vmul.f32 %v180, %v354
    %v371 = vmul.f32 %v183, %v355
    %v372 = vmul.f32 %v188, %v356
    %v373 = vmul.f32 %v191, %v357
    %v374 = vmul.f32 %v196, %v358
    %v375 = vmul.f32 %v199, %v359
    %v376 = vmul.f32 %v204, %v360
    %v377 = vmul.f32 %v207, %v361
    %v378 = vmul.f32 %v212, %v362
    %v379 = vmul.f32 %v215, %v363
    %v380 = vmul.f32 %v220, %v364
    %v381 = vmul.f32 %v223, %v365
    %v382 = vmul.f32 %v228, %v366
    %v383 = vmul.f32 %v231, %v367
    %v384 = vmul.f32 %v236, %v368
    %v385 = vmul.f32 %v239, %v369
    %v386 = vld [vmem:[%s3] sm:$0xff]
    %387 = vmatprep.subr.mxu0 0.0
    %388 = vmatpush1.msra.mxu0 %v385
    %389 = vmatprep.subr.mxu0 0.0
    %390 = vmatpush1.msra.mxu0 %v384
    %391 = vmatprep.subr.mxu0 0.0
    %392 = vmatpush1.msra.mxu0 %v383
    %393 = vmatprep.subr.mxu0 0.0
    %394 = vmatpush1.msra.mxu0 %v382
    %395 = vmatprep.subr.mxu0 0.0
    %396 = vmatpush1.msra.mxu0 %v381
    %397 = vmatprep.subr.mxu0 0.0
    %398 = vmatpush1.msra.mxu0 %v380
    %399 = vmatprep.subr.mxu0 0.0
    %400 = vmatpush1.msra.mxu0 %v379
    %401 = vmatprep.subr.mxu0 0.0
    %402 = vmatpush1.msra.mxu0 %v378
    %403 = vmatprep.subr.mxu0 0.0
    %404 = vmatpush1.msra.mxu0 %v377
    %405 = vmatprep.subr.mxu0 0.0
    %406 = vmatpush1.msra.mxu0 %v376
    %407 = vmatprep.subr.mxu0 0.0
    %408 = vmatpush1.msra.mxu0 %v375
    %409 = vmatprep.subr.mxu0 0.0
    %410 = vmatpush1.msra.mxu0 %v374
    %411 = vmatprep.subr.mxu0 0.0
    %412 = vmatpush1.msra.mxu0 %v373
    %413 = vmatprep.subr.mxu0 0.0
    %414 = vmatpush1.msra.mxu0 %v372
    %415 = vmatprep.subr.mxu0 0.0
    %416 = vmatpush1.msra.mxu0 %v371
    %417 = vmatprep.subr.mxu0 0.0
    %418 = vmatpush1.msra.mxu0 %v370
    %419 = vmatprep.subr.mxu0 0.0
    %420 = vmatpush2.msra.mxu0 0.0
    %421 = vmatprep.subr.mxu0 0.0
    %422 = vmatpush2.msra.mxu0 0.0
    %423 = vmatprep.subr.mxu0 0.0
    %424 = vmatpush2.msra.mxu0 0.0
    %425 = vmatprep.subr.mxu0 0.0
    %426 = vmatpush2.msra.mxu0 0.0
    %427 = vmatprep.subr.mxu0 0.0
    %428 = vmatpush2.msra.mxu0 0.0
    %429 = vmatprep.subr.mxu0 0.0
    %430 = vmatpush2.msra.mxu0 0.0
    %431 = vmatprep.subr.mxu0 0.0
    %432 = vmatpush2.msra.mxu0 0.0
    %433 = vmatprep.subr.mxu0 0.0
    %434 = vmatpush2.msra.mxu0 0.0
    %435 = vmatprep.subr.mxu0 0.0
    %436 = vmatpush2.msra.mxu0 0.0
    %437 = vmatprep.subr.mxu0 0.0
    %438 = vmatpush2.msra.mxu0 0.0
    %439 = vmatprep.subr.mxu0 0.0
    %440 = vmatpush2.msra.mxu0 0.0
    %441 = vmatprep.subr.mxu0 0.0
    %442 = vmatpush2.msra.mxu0 0.0
    %443 = vmatprep.subr.mxu0 0.0
    %444 = vmatpush2.msra.mxu0 0.0
    %445 = vmatprep.subr.mxu0 0.0
    %446 = vmatpush2.msra.mxu0 0.0
    %447 = vmatprep.subr.mxu0 0.0
    %448 = vmatpush2.msra.mxu0 0.0
    %449 = vmatprep.subr.mxu0 0.0
    %450 = vmatpush2.msra.mxu0 0.0
    %451 = vmatprep.mubr.f32.mxu0 0.0
    %452 = vmatmul.mubr.f32.gmra.mxu0 %v386
    %v453 = vpop.f32.mrf.mxu0
    %v454 = vadd.f32 0.0, %v453
    %v455 = vpop.f32.mrf.mxu0
    %456 = vdwg.mxu0
    %v457 = vld [vmem:[%s4] sm:$0xff]
    %v458 = vld [vmem:[%s4 + $0x8] sm:$0xff]
    %v459 = vld [vmem:[%s4 + $0x10] sm:$0xff]
    %v460 = vld [vmem:[%s4 + $0x18] sm:$0xff]
    %v461 = vld [vmem:[%s5] sm:$0x1]
    %v463 = vlaneseq
    %v464 = vshrl.u32 %v463, 7
    %v465 = vsub.s32 0, %v464
    %v466 = vrot.slane %v461, %v465
    %vm468 = vcmask 261120
    %v470 = vsel %vm468, %v454, 0
    %472 = vmatprep.subr.mxu0 0.0
    %473 = vmatpush1.msra.mxu0 0.0
    %474 = vmatprep.subr.mxu0 0.0
    %475 = vmatpush1.msra.mxu0 0.0
    %476 = vmatprep.subr.mxu0 0.0
    %477 = vmatpush1.msra.mxu0 0.0
    %478 = vmatprep.subr.mxu0 0.0
    %479 = vmatpush1.msra.mxu0 0.0
    %480 = vmatprep.subr.mxu0 0.0
    %481 = vmatpush1.msra.mxu0 0.0
    %482 = vmatprep.subr.mxu0 0.0
    %483 = vmatpush1.msra.mxu0 0.0
    %484 = vmatprep.subr.mxu0 0.0
    %485 = vmatpush1.msra.mxu0 0.0
    %486 = vmatprep.subr.mxu0 0.0
    %487 = vmatpush1.msra.mxu0 0.0
    %488 = vmatprep.subr.mxu0 0.0
    %489 = vmatpush1.msra.mxu0 0.0
    %490 = vmatprep.subr.mxu0 0.0
    %491 = vmatpush1.msra.mxu0 0.0
    %492 = vmatprep.subr.mxu0 0.0
    %493 = vmatpush1.msra.mxu0 0.0
    %494 = vmatprep.subr.mxu0 0.0
    %495 = vmatpush1.msra.mxu0 0.0
    %496 = vmatprep.subr.mxu0 0.0
    %497 = vmatpush1.msra.mxu0 %v460
    %498 = vmatprep.subr.mxu0 0.0
    %499 = vmatpush1.msra.mxu0 %v459
    %500 = vmatprep.subr.mxu0 0.0
    %501 = vmatpush1.msra.mxu0 %v458
    %502 = vmatprep.subr.mxu0 0.0
    %503 = vmatpush1.msra.mxu0 %v457
    %504 = vmatprep.subr.mxu0 0.0
    %505 = vmatpush2.msra.mxu0 0.0
    %506 = vmatprep.subr.mxu0 0.0
    %507 = vmatpush2.msra.mxu0 0.0
    %508 = vmatprep.subr.mxu0 0.0
    %509 = vmatpush2.msra.mxu0 0.0
    %510 = vmatprep.subr.mxu0 0.0
    %511 = vmatpush2.msra.mxu0 0.0
    %512 = vmatprep.subr.mxu0 0.0
    %513 = vmatpush2.msra.mxu0 0.0
    %514 = vmatprep.subr.mxu0 0.0
    %515 = vmatpush2.msra.mxu0 0.0
    %516 = vmatprep.subr.mxu0 0.0
    %517 = vmatpush2.msra.mxu0 0.0
    %518 = vmatprep.subr.mxu0 0.0
    %519 = vmatpush2.msra.mxu0 0.0
    %520 = vmatprep.subr.mxu0 0.0
    %521 = vmatpush2.msra.mxu0 0.0
    %522 = vmatprep.subr.mxu0 0.0
    %523 = vmatpush2.msra.mxu0 0.0
    %524 = vmatprep.subr.mxu0 0.0
    %525 = vmatpush2.msra.mxu0 0.0
    %526 = vmatprep.subr.mxu0 0.0
    %527 = vmatpush2.msra.mxu0 0.0
    %528 = vmatprep.subr.mxu0 0.0
    %529 = vmatpush2.msra.mxu0 0.0
    %530 = vmatprep.subr.mxu0 0.0
    %531 = vmatpush2.msra.mxu0 0.0
    %532 = vmatprep.subr.mxu0 0.0
    %533 = vmatpush2.msra.mxu0 0.0
    %534 = vmatprep.subr.mxu0 0.0
    %535 = vmatpush2.msra.mxu0 0.0
    %536 = vmatprep.mubr.f32.mxu0 0.0
    %537 = vmatmul.mubr.f32.gmra.mxu0 %v470
    %v538 = vpop.f32.mrf.mxu0
    %v539 = vadd.f32 %v466, %v538
    %v540 = vpop.f32.mrf.mxu0
    %541 = vdwg.mxu0
    %542 = vst [vmem:[#allocation2] sm:$0xff] %v539
    // Predicated region
    $region26: #{tpu_custom_call.1} parent=1 // pred_check
      _
    $region27: #{tpu_custom_call.1} parent=1 // pred_check_branch
      %544 = sbr.rel (0) target = $region29
    $region28: #{tpu_custom_call.1} parent=1 // pred_region
      %s546 = ssub.s32 128, 128
      %547 = vsyncadd [#allocation3], %s546
      %s549 = sshll.u32 [#allocation2], 4
      %s550 = int_to_ptr.vmem [resolvable:$true] %s549
      %552 = dma.vmem_to_hbm [thread:$0]  %s550, 128, %s6, [#allocation3]
    $region29: #{tpu_custom_call.1} parent=1 // pred_fallthru
      _
    // Predicated region
    $region30: #{tpu_custom_call.1} parent=1 // pred_check
      _
    $region31: #{tpu_custom_call.1} parent=1 // pred_check_branch
      %554 = sbr.rel (0) target = $region33
    $region32: #{tpu_custom_call.1} parent=1 // pred_region
      %555 = dma.done [#allocation3], 128
    $region33: #{tpu_custom_call.1} parent=1 // pred_fallthru
      _
    %556 = vsyncpa [#allocation3], 1

</llo_original>
